<compile_context>
chip_gen: v7x
topology: tpu7x:2x2x1
jax: 0.10.0
libtpu: 0.0.40
codegen_flags: <defaults>
</compile_context>

<pallas_src>
import functools

import numpy as np

import jax
import jax.numpy as jnp
from jax.experimental import pallas as pl
from jax.experimental.pallas import tpu as pltpu

EPS = 1e-5
_LANE = 128
_STATS_ROWS = 8              # sublane-aligned stats block: row0 = sum, row1 = sum(x^2)
_MAX_TILE_M = 512            # rows per tile for the flat (M, C) matmul kernels


# ------------------------------- helpers ----------------------------------- #

def _lane_pad(c):
    return ((c + _LANE - 1) // _LANE) * _LANE


def _pad_last(a, target):
    pad = target - a.shape[-1]
    if pad == 0:
        return a
    return jnp.pad(a, [(0, 0)] * (a.ndim - 1) + [(0, pad)])


def _pad_last2(a, t_rows, t_cols):
    pr, pc = t_rows - a.shape[-2], t_cols - a.shape[-1]
    if pr == 0 and pc == 0:
        return a
    return jnp.pad(a, [(0, 0)] * (a.ndim - 2) + [(0, pr), (0, pc)])


@functools.lru_cache(maxsize=1)
def _hw_budgets():
    # (vmem_limit_bytes, max rows per 3x3 tile); conservative on 64-MiB-VMEM parts.
    cap = None
    try:
        info = pltpu.get_tpu_info()
        cap = getattr(info, "vmem_capacity_bytes", None)
        if cap is None:
            cap = getattr(info, "vmem_size_bytes", None)
    except Exception:
        cap = None
    if cap is not None and cap >= 100 * (1 << 20):      # 128-MiB parts (v5e / v6e)
        return 48 * (1 << 20), 2048
    return 30 * (1 << 20), 1024                          # 64-MiB parts (v7x) / unknown


def _pick_tile_m(m):
    """Row tile for flat (M, C) kernels: (tile, n_blocks, exact_divide)."""
    for t in (_MAX_TILE_M, 256, 128, 64, 32, 16, 8):
        if m % t == 0:
            return t, m // t, True
    # Never fall back to a single giant block: cdiv grid + stats masking instead.
    t = min(_MAX_TILE_M, ((m + 7) // 8) * 8)
    return t, -(-m // t), False


def _pick_group(n, hw, max_rows):
    # group of whole images per 3x3-conv tile; prefer sublane-aligned row counts
    # and >=2 grid blocks (pipelining / megacore sharding).
    fits = [g for g in range(1, n + 1) if n % g == 0 and g * hw <= max_rows]
    aligned = [g for g in fits if (g * hw) % 8 == 0]
    pool = aligned or fits or [1]
    multi = [g for g in pool if n // g >= 2]
    return max(multi) if multi else max(pool)


def _stats_reduce(stats, nblk):
    st = stats.reshape(nblk, _STATS_ROWS, stats.shape[-1])
    return st[:, 0, :].sum(axis=0), st[:, 1, :].sum(axis=0)


def _bn_scale_shift(psum, psumsq, count, gamma, beta):
    # training-mode BN (biased variance), folded into per-channel scale/shift
    mean = psum / count
    var = jnp.maximum(psumsq / count - mean * mean, 0.0)
    scale = gamma * jax.lax.rsqrt(var + EPS)
    shift = beta - mean * scale
    return scale.reshape(1, -1), shift.reshape(1, -1)


def _compiler_params():
    vmem_limit, _ = _hw_budgets()
    return pltpu.CompilerParams(dimension_semantics=("parallel",),
                                vmem_limit_bytes=vmem_limit)


def _stats_block(ys, total_rows, tile_rows):
    # Build the full (8, C) stats block in registers and return it for one store.
    # Rows beyond the true M (cdiv-grid partial tile) are masked out of the sums.
    if total_rows is not None:
        rid = jax.lax.broadcasted_iota(jnp.int32, (ys.shape[0], 1), 0) \
              + pl.program_id(0) * tile_rows
        ys = jnp.where(rid < total_rows, ys, 0.0)
    c = ys.shape[-1]
    return jnp.concatenate(
        [jnp.sum(ys, axis=0, keepdims=True),
         jnp.sum(ys * ys, axis=0, keepdims=True),
         jnp.zeros((_STATS_ROWS - 2, c), jnp.float32)], axis=0)


# ----------------------------- Pallas kernels ------------------------------ #

def _mm_bn_stats_kernel(x_ref, w_ref, scale_ref, shift_ref, o_ref, stats_ref,
                        *, apply_input_bn_relu, total_rows, tile_rows):
    # (optional) previous layer's BN-apply + ReLU fused on the (bf16) input load,
    # bf16 matmul on the MXU (f32 accumulate), bf16 output + per-tile BN stats.
    x = x_ref[...]
    if apply_input_bn_relu:
        x = jnp.maximum(x.astype(jnp.float32) * scale_ref[...] + shift_ref[...], 0.0)
        x = x.astype(jnp.bfloat16)
    y = jnp.dot(x, w_ref[...], preferred_element_type=jnp.float32)
    yb = y.astype(jnp.bfloat16)
    o_ref[...] = yb
    stats_ref[...] = _stats_block(yb.astype(jnp.float32), total_rows, tile_rows)


def _mm_dual_bn_stats_kernel(x_ref, w_ref, o1_ref, o2_ref, stats_ref,
                             *, split, total_rows, tile_rows):
    # conv1 and shortcut conv fused into one matmul (weights concatenated along
    # Cout); the single bf16 input tile is read from HBM once.
    y = jnp.dot(x_ref[...], w_ref[...], preferred_element_type=jnp.float32)
    yb = y.astype(jnp.bfloat16)
    o1_ref[...] = yb[:, :split]
    o2_ref[...] = yb[:, split:]
    stats_ref[...] = _stats_block(yb.astype(jnp.float32), total_rows, tile_rows)


def _conv3x3_bn_stats_kernel(x_ref, w_ref, scale_ref, shift_ref, mask_ref,
                             o_ref, stats_ref, acc_ref, *, W):
    # 3x3 conv (pad=1, stride=1) on a tile of whole images: 9 matmuls accumulated
    # into a VMEM f32 scratch over row-shifted (pltpu.roll) + boundary-masked
    # copies of the tile. BN1-apply + ReLU fused on the input; taps in bf16.
    R = x_ref.shape[0]
    xb = jnp.maximum(x_ref[...].astype(jnp.float32) * scale_ref[...] + shift_ref[...],
                     0.0).astype(jnp.bfloat16)              # single hoisted cast
    acc_ref[...] = jnp.zeros_like(acc_ref)
    for dy in range(3):
        for dx in range(3):
            t = dy * 3 + dx
            off = (dy - 1) * W + (dx - 1)          # flat row offset of this tap
            if off == 0:
                tap = xb                           # center tap: no roll, mask is all-ones
            else:
                tap = pltpu.roll(xb, shift=(-off) % R, axis=0) * mask_ref[t]
            acc_ref[...] += jnp.dot(tap, w_ref[t], preferred_element_type=jnp.float32)
    yb = acc_ref[...].astype(jnp.bfloat16)
    o_ref[...] = yb
    stats_ref[...] = _stats_block(yb.astype(jnp.float32), None, R)


def _residual_finalize_kernel(y3_ref, res_ref, s3_ref, b3_ref, rs_ref, rb_ref, o_ref):
    # BN3-apply + ReLU (end of `left`), residual BN-apply, add, final ReLU.
    left = jnp.maximum(y3_ref[...].astype(jnp.float32) * s3_ref[...] + b3_ref[...], 0.0)
    res = res_ref[...].astype(jnp.float32) * rs_ref[...] + rb_ref[...]
    o_ref[...] = jnp.maximum(left + res, 0.0)


# --------------------------- pallas_call wrappers --------------------------- #

def _conv1x1_bn_stats(x2d, w_bf16, in_scale=None, in_shift=None):
    m, k = x2d.shape
    cout = w_bf16.shape[1]
    tm, nblk, exact = _pick_tile_m(m)
    tot = None if exact else m
    apply_in = in_scale is not None
    if in_scale is None:
        in_scale = jnp.ones((1, k), jnp.float32)
        in_shift = jnp.zeros((1, k), jnp.float32)
    kern = functools.partial(_mm_bn_stats_kernel, apply_input_bn_relu=apply_in,
                             total_rows=tot, tile_rows=tm)
    y, stats = pl.pallas_call(
        kern,
        grid=(nblk,),
        in_specs=[
            pl.BlockSpec((tm, k), lambda i: (i, 0)),
            pl.BlockSpec((k, cout), lambda i: (0, 0)),   # weights resident
            pl.BlockSpec((1, k), lambda i: (0, 0)),
            pl.BlockSpec((1, k), lambda i: (0, 0)),
        ],
        out_specs=[
            pl.BlockSpec((tm, cout), lambda i: (i, 0)),
            pl.BlockSpec((_STATS_ROWS, cout), lambda i: (i, 0)),
        ],
        out_shape=[
            jax.ShapeDtypeStruct((m, cout), jnp.bfloat16),
            jax.ShapeDtypeStruct((nblk * _STATS_ROWS, cout), jnp.float32),
        ],
        compiler_params=_compiler_params(),
    )(x2d, w_bf16, in_scale, in_shift)
    s, sq = _stats_reduce(stats, nblk)
    return y, s, sq


def _conv1x1_dual_bn_stats(x2d, w_cat_bf16, split):
    m, k = x2d.shape
    ktot = w_cat_bf16.shape[1]
    c2 = ktot - split
    tm, nblk, exact = _pick_tile_m(m)
    tot = None if exact else m
    kern = functools.partial(_mm_dual_bn_stats_kernel, split=split,
                             total_rows=tot, tile_rows=tm)
    o1, o2, stats = pl.pallas_call(
        kern,
        grid=(nblk,),
        in_specs=[
            pl.BlockSpec((tm, k), lambda i: (i, 0)),
            pl.BlockSpec((k, ktot), lambda i: (0, 0)),
        ],
        out_specs=[
            pl.BlockSpec((tm, split), lambda i: (i, 0)),
            pl.BlockSpec((tm, c2), lambda i: (i, 0)),
            pl.BlockSpec((_STATS_ROWS, ktot), lambda i: (i, 0)),
        ],
        out_shape=[
            jax.ShapeDtypeStruct((m, split), jnp.bfloat16),
            jax.ShapeDtypeStruct((m, c2), jnp.bfloat16),
            jax.ShapeDtypeStruct((nblk * _STATS_ROWS, ktot), jnp.float32),
        ],
        compiler_params=_compiler_params(),
    )(x2d, w_cat_bf16)
    s, sq = _stats_reduce(stats, nblk)
    return o1, o2, s, sq


def _make_tap_masks(h, w, g):
    # static 0/1 masks marking which shifted rows are inside the image for each
    # of the 9 taps (handles the pad=1 boundary without materializing padding).
    hw = h * w
    p = np.arange(hw)
    i, j = p // w, p % w
    masks = np.zeros((9, hw), np.float32)
    for dy in range(3):
        for dx in range(3):
            ii, jj = i + dy - 1, j + dx - 1
            masks[dy * 3 + dx] = ((ii >= 0) & (ii < h) & (jj >= 0) & (jj < w))
    masks = np.tile(masks, (1, g))
    return jnp.asarray(masks[:, :, None], dtype=jnp.bfloat16)   # (9, g*h*w, 1)


def _conv3x3_bn_stats(x2d, w9_bf16, in_scale, in_shift, h, w, n):
    m, cin = x2d.shape
    cout = w9_bf16.shape[-1]
    _, max_rows = _hw_budgets()
    g = _pick_group(n, h * w, max_rows)
    r = g * h * w                                   # rows per tile (whole images)
    nblk = m // r
    masks = _make_tap_masks(h, w, g)
    kern = functools.partial(_conv3x3_bn_stats_kernel, W=w)
    y, stats = pl.pallas_call(
        kern,
        grid=(nblk,),
        in_specs=[
            pl.BlockSpec((r, cin), lambda i: (i, 0)),
            pl.BlockSpec((9, cin, cout), lambda i: (0, 0, 0)),
            pl.BlockSpec((1, cin), lambda i: (0, 0)),
            pl.BlockSpec((1, cin), lambda i: (0, 0)),
            pl.BlockSpec((9, r, 1), lambda i: (0, 0, 0)),
        ],
        out_specs=[
            pl.BlockSpec((r, cout), lambda i: (i, 0)),
            pl.BlockSpec((_STATS_ROWS, cout), lambda i: (i, 0)),
        ],
        out_shape=[
            jax.ShapeDtypeStruct((m, cout), jnp.bfloat16),
            jax.ShapeDtypeStruct((nblk * _STATS_ROWS, cout), jnp.float32),
        ],
        scratch_shapes=[pltpu.VMEM((r, cout), jnp.float32)],    # 9-tap accumulator
        compiler_params=_compiler_params(),
    )(x2d, w9_bf16, in_scale, in_shift, masks)
    s, sq = _stats_reduce(stats, nblk)
    return y, s, sq


def _residual_finalize(y3, res, s3, b3, rs, rb):
    m, c = y3.shape
    tm, nblk, _ = _pick_tile_m(m)
    return pl.pallas_call(
        _residual_finalize_kernel,
        grid=(nblk,),
        in_specs=[
            pl.BlockSpec((tm, c), lambda i: (i, 0)),
            pl.BlockSpec((tm, c), lambda i: (i, 0)),
            pl.BlockSpec((1, c), lambda i: (0, 0)),
            pl.BlockSpec((1, c), lambda i: (0, 0)),
            pl.BlockSpec((1, c), lambda i: (0, 0)),
            pl.BlockSpec((1, c), lambda i: (0, 0)),
        ],
        out_specs=pl.BlockSpec((tm, c), lambda i: (i, 0)),
        out_shape=jax.ShapeDtypeStruct((m, c), jnp.float32),
        compiler_params=_compiler_params(),
    )(y3, res, s3, b3, rs, rb)


# ------------------------------ parameters ---------------------------------- #

def init_params(key, inchannel, outchannel, pre_channel=None):
    has_shortcut_conv = pre_channel is not None
    pre = outchannel if pre_channel is None else pre_channel
    ks = jax.random.split(key, 12)

    def w(k, shape, fan_in):
        return jax.random.normal(k, shape, jnp.float32) / jnp.sqrt(float(fan_in))

    p = {
        "w1": w(ks[0], (pre, inchannel), pre),                        # 1x1 conv (Cin, Cout)
        "g1": 1.0 + 0.1 * jax.random.normal(ks[1], (inchannel,), jnp.float32),
        "b1": 0.1 * jax.random.normal(ks[2], (inchannel,), jnp.float32),
        "w2": w(ks[3], (3, 3, inchannel, inchannel), 9 * inchannel),  # 3x3 conv, HWIO
        "g2": 1.0 + 0.1 * jax.random.normal(ks[4], (inchannel,), jnp.float32),
        "b2": 0.1 * jax.random.normal(ks[5], (inchannel,), jnp.float32),
        "w3": w(ks[6], (inchannel, outchannel), inchannel),           # 1x1 conv (Cin, Cout)
        "g3": 1.0 + 0.1 * jax.random.normal(ks[7], (outchannel,), jnp.float32),
        "b3": 0.1 * jax.random.normal(ks[8], (outchannel,), jnp.float32),
    }
    if has_shortcut_conv:
        p["ws"] = w(ks[9], (pre, outchannel), pre)                    # shortcut 1x1 conv
        p["gs"] = 1.0 + 0.1 * jax.random.normal(ks[10], (outchannel,), jnp.float32)
        p["bs"] = 0.1 * jax.random.normal(ks[11], (outchannel,), jnp.float32)
    return p


# ------------------------------ forward pass -------------------------------- #

def bottleneck_forward(x_nchw, params, *, stride=1):
    x = jnp.transpose(x_nchw, (0, 2, 3, 1)).astype(jnp.float32)       # NHWC
    n, h, w, cpre = x.shape
    inch = params["w1"].shape[1]
    outch = params["w3"].shape[1]
    has_sc = "ws" in params
    if not has_sc:
        assert stride == 1 and cpre == outch, (
            "identity shortcut requires stride==1 and pre_channel==outchannel")

    # TODO(synk): absorb the strided subsample into the first conv's index_map;
    # for now the slice + lane-pad + bf16 cast fuse into a single XLA pass.
    xs = x[:, ::stride, ::stride, :]
    ho, wo = xs.shape[1], xs.shape[2]
    m = n * ho * wo

    cpre_p, inch_p, outch_p = _lane_pad(cpre), _lane_pad(inch), _lane_pad(outch)
    xs2d = _pad_last(xs.reshape(m, cpre), cpre_p).astype(jnp.bfloat16)

    # lane-padded bf16 weights; padded gammas/betas are 0 => padded lanes stay 0
    w1p = _pad_last2(params["w1"], cpre_p, inch_p).astype(jnp.bfloat16)
    w2p = _pad_last2(params["w2"].reshape(9, inch, inch), inch_p, inch_p).astype(jnp.bfloat16)
    w3p = _pad_last2(params["w3"], inch_p, outch_p).astype(jnp.bfloat16)
    g1p, b1p = _pad_last(params["g1"], inch_p), _pad_last(params["b1"], inch_p)
    g2p, b2p = _pad_last(params["g2"], inch_p), _pad_last(params["b2"], inch_p)
    g3p, b3p = _pad_last(params["g3"], outch_p), _pad_last(params["b3"], outch_p)

    # --- conv1 (1x1, stride) [+ fused shortcut 1x1 conv] + BN stats ----------
    if has_sc:
        wsp = _pad_last2(params["ws"], cpre_p, outch_p).astype(jnp.bfloat16)
        wcat = jnp.concatenate([w1p, wsp], axis=1)        # (cpre_p, inch_p + outch_p)
        y1_raw, res_raw, s, sq = _conv1x1_dual_bn_stats(xs2d, wcat, inch_p)
        s1, ss = s[:inch_p], s[inch_p:]
        sq1, sqs = sq[:inch_p], sq[inch_p:]
        gsp, bsp = _pad_last(params["gs"], outch_p), _pad_last(params["bs"], outch_p)
        res_scale, res_shift = _bn_scale_shift(ss, sqs, m, gsp, bsp)
    else:
        y1_raw, s1, sq1 = _conv1x1_bn_stats(xs2d, w1p)
        res_raw = xs2d                                    # identity shortcut (bf16)
        res_scale = jnp.ones((1, outch_p), jnp.float32)
        res_shift = jnp.zeros((1, outch_p), jnp.float32)
    scale1, shift1 = _bn_scale_shift(s1, sq1, m, g1p, b1p)

    # --- conv2 (3x3, pad=1) with BN1-apply+ReLU fused on its input -----------
    y2_raw, s2, sq2 = _conv3x3_bn_stats(y1_raw, w2p, scale1, shift1, ho, wo, n)
    scale2, shift2 = _bn_scale_shift(s2, sq2, m, g2p, b2p)

    # --- conv3 (1x1) with BN2-apply+ReLU fused on its input ------------------
    y3_raw, s3, sq3 = _conv1x1_bn_stats(y2_raw, w3p, scale2, shift2)
    scale3, shift3 = _bn_scale_shift(s3, sq3, m, g3p, b3p)

    # --- BN3-apply+ReLU, residual BN-apply, add, final ReLU ------------------
    out2d = _residual_finalize(y3_raw, res_raw, scale3, shift3, res_scale, res_shift)
    out = out2d.reshape(n, ho, wo, outch_p)[..., :outch]
    return jnp.transpose(out, (0, 3, 1, 2))               # back to NCHW


# --------------------------- pure-JAX reference ----------------------------- #

def _ref_conv_bn(x, w_hwio, gamma, beta, stride, padding, relu):
    y = jax.lax.conv_general_dilated(
        x, w_hwio, window_strides=(stride, stride), padding=padding,
        dimension_numbers=("NHWC", "HWIO", "NHWC"))
    mean = jnp.mean(y, axis=(0, 1, 2))
    var = jnp.mean((y - mean) ** 2, axis=(0, 1, 2))
    y = (y - mean) / jnp.sqrt(var + EPS) * gamma + beta
    return jnp.maximum(y, 0.0) if relu else y


def bottleneck_ref(x_nchw, params, *, stride=1):
    x = jnp.transpose(x_nchw, (0, 2, 3, 1)).astype(jnp.float32)
    inch = params["w1"].shape[1]
    y = _ref_conv_bn(x, params["w1"].reshape(1, 1, -1, inch), params["g1"], params["b1"],
                     stride, "VALID", True)
    y = _ref_conv_bn(y, params["w2"], params["g2"], params["b2"], 1, ((1, 1), (1, 1)), True)
    y = _ref_conv_bn(y, params["w3"].reshape(1, 1, inch, -1), params["g3"], params["b3"],
                     1, "VALID", True)
    if "ws" in params:
        res = _ref_conv_bn(x, params["ws"].reshape(1, 1, x.shape[-1], -1),
                           params["gs"], params["bs"], stride, "VALID", False)
    else:
        res = x
    out = jnp.maximum(y + res, 0.0)
    return jnp.transpose(out, (0, 3, 1, 2))


# ---------------------------------- main ------------------------------------ #
# NOTE: these toy channel counts pad 4/8/16 -> 128 lanes, so they exercise
# correctness only; tile-size tuning should be done at real ResNet channel counts.

if __name__ == "__main__":
    key = jax.random.PRNGKey(0)
    kx1, kx2, kp1, kp2 = jax.random.split(key, 4)

    # Case 1: downsampling bottleneck (pre_channel given -> conv shortcut, stride=2)
    x1 = jax.random.normal(kx1, (2, 8, 8, 8), jnp.float32)   # NCHW: N=2, C=pre_channel=8
    p1 = init_params(kp1, inchannel=4, outchannel=16, pre_channel=8)
    out1 = jax.block_until_ready(bottleneck_forward(x1, p1, stride=2))
    ref1 = bottleneck_ref(x1, p1, stride=2)
    assert out1.shape == (2, 16, 4, 4), out1.shape
    err1 = float(jnp.max(jnp.abs(out1 - ref1)))
    assert jnp.allclose(out1, ref1, rtol=5e-2, atol=5e-2), err1

    # Case 2: identity-shortcut bottleneck (pre_channel=None, stride=1)
    x2 = jax.random.normal(kx2, (2, 16, 8, 8), jnp.float32)  # NCHW: N=2, C=outchannel=16
    p2 = init_params(kp2, inchannel=4, outchannel=16, pre_channel=None)
    out2 = jax.block_until_ready(bottleneck_forward(x2, p2, stride=1))
    ref2 = bottleneck_ref(x2, p2, stride=1)
    assert out2.shape == (2, 16, 8, 8), out2.shape
    err2 = float(jnp.max(jnp.abs(out2 - ref2)))
    assert jnp.allclose(out2, ref2, rtol=5e-2, atol=5e-2), err2

    print("KERNEL_OK")
</pallas_src>

<mosaic_0001>
module attributes {stable_mosaic.version = 11 : i64} {
  func.func @_mm_dual_bn_stats_kernel(%arg0: i32, %arg1: memref<32x128xbf16, #tpu.memory_space<vmem>>, %arg2: memref<128x256xbf16, #tpu.memory_space<vmem>>, %arg3: memref<32x128xbf16, #tpu.memory_space<vmem>>, %arg4: memref<32x128xbf16, #tpu.memory_space<vmem>>, %arg5: memref<8x256xf32, #tpu.memory_space<vmem>>) attributes {dimension_semantics = [#tpu.dimension_semantics<parallel>], iteration_bounds = array<i64: 1>, scalar_prefetch = 0 : i64, scratch_operands = 0 : i64, tpu.core_type = #tpu.core_type<tc>, window_params = [{transform_indices = @transform_0, window_bounds = array<i64: 32, 128>}, {pipeline_mode = #tpu.pipeline_mode<synchronous>, transform_indices = @transform_1, window_bounds = array<i64: 128, 256>}, {transform_indices = @transform_2, window_bounds = array<i64: 32, 128>}, {transform_indices = @transform_3, window_bounds = array<i64: 32, 128>}, {transform_indices = @transform_4, window_bounds = array<i64: 8, 256>}]} {
    %c0 = arith.constant 0 : index
    %c0_0 = arith.constant 0 : index
    %0 = vector.load %arg1[%c0, %c0_0] : memref<32x128xbf16, #tpu.memory_space<vmem>>, vector<32x128xbf16>
    %c0_1 = arith.constant 0 : index
    %c0_2 = arith.constant 0 : index
    %1 = vector.load %arg2[%c0_1, %c0_2] : memref<128x256xbf16, #tpu.memory_space<vmem>>, vector<128x256xbf16>
    %cst = arith.constant dense<0.000000e+00> : vector<32x256xf32>
    %2 = tpu.matmul %0, %1, %cst {dimension_numbers = #tpu.dot_dimension_numbers<[1], [0], [0], [1], [0, 0, 1, 1], [], []>} : vector<32x128xbf16>, vector<128x256xbf16>, vector<32x256xf32> -> vector<32x256xf32>
    %3 = arith.truncf %2 : vector<32x256xf32> to vector<32x256xbf16>
    %4 = vector.extract_strided_slice %3 {offsets = [0, 0], sizes = [32, 128], strides = [1, 1]} : vector<32x256xbf16> to vector<32x128xbf16>
    %c0_3 = arith.constant 0 : index
    %c0_4 = arith.constant 0 : index
    %5 = vector.load %arg3[%c0_3, %c0_4] : memref<32x128xbf16, #tpu.memory_space<vmem>>, vector<32x128xbf16>
    tpu.vector_store %arg3[%c0_3, %c0_4], %4 {strides = array<i32>} : memref<32x128xbf16, #tpu.memory_space<vmem>>, vector<32x128xbf16>,
    %6 = vector.extract_strided_slice %3 {offsets = [0, 128], sizes = [32, 128], strides = [1, 1]} : vector<32x256xbf16> to vector<32x128xbf16>
    %c0_5 = arith.constant 0 : index
    %c0_6 = arith.constant 0 : index
    %7 = vector.load %arg4[%c0_5, %c0_6] : memref<32x128xbf16, #tpu.memory_space<vmem>>, vector<32x128xbf16>
    tpu.vector_store %arg4[%c0_5, %c0_6], %6 {strides = array<i32>} : memref<32x128xbf16, #tpu.memory_space<vmem>>, vector<32x128xbf16>,
    %8 = arith.extf %3 : vector<32x256xbf16> to vector<32x256xf32>
    %cst_7 = arith.constant dense<0.000000e+00> : vector<256xf32>
    %9 = vector.multi_reduction <add>, %8, %cst_7 [0] : vector<32x256xf32> to vector<256xf32>
    %10 = vector.shape_cast %9 : vector<256xf32> to vector<1x256xf32>
    %11 = arith.mulf %8, %8 : vector<32x256xf32>
    %cst_8 = arith.constant dense<0.000000e+00> : vector<256xf32>
    %12 = vector.multi_reduction <add>, %11, %cst_8 [0] : vector<32x256xf32> to vector<256xf32>
    %13 = vector.shape_cast %12 : vector<256xf32> to vector<1x256xf32>
    %cst_9 = arith.constant 0.000000e+00 : f32
    %14 = vector.broadcast %cst_9 : f32 to vector<6x256xf32>
    %15 = tpu.concatenate %10, %13, %14 in 0 : vector<1x256xf32>, vector<1x256xf32>, vector<6x256xf32> -> vector<8x256xf32>
    %c0_10 = arith.constant 0 : index
    %c0_11 = arith.constant 0 : index
    %16 = vector.load %arg5[%c0_10, %c0_11] : memref<8x256xf32, #tpu.memory_space<vmem>>, vector<8x256xf32>
    tpu.vector_store %arg5[%c0_10, %c0_11], %15 {strides = array<i32>} : memref<8x256xf32, #tpu.memory_space<vmem>>, vector<8x256xf32>,
    return
  }
  func.func @transform_0(%arg0: i32) -> (i32, i32) {
    %c0_i32 = arith.constant 0 : i32
    %c0_i32_0 = arith.constant 0 : i32
    return %arg0, %c0_i32 : i32, i32
  }
  func.func @transform_1(%arg0: i32) -> (i32, i32) {
    %c0_i32 = arith.constant 0 : i32
    %c0_i32_0 = arith.constant 0 : i32
    %c0_i32_1 = arith.constant 0 : i32
    return %c0_i32, %c0_i32_0 : i32, i32
  }
  func.func @transform_2(%arg0: i32) -> (i32, i32) {
    %c0_i32 = arith.constant 0 : i32
    %c0_i32_0 = arith.constant 0 : i32
    return %arg0, %c0_i32 : i32, i32
  }
  func.func @transform_3(%arg0: i32) -> (i32, i32) {
    %c0_i32 = arith.constant 0 : i32
    %c0_i32_0 = arith.constant 0 : i32
    return %arg0, %c0_i32 : i32, i32
  }
  func.func @transform_4(%arg0: i32) -> (i32, i32) {
    %c0_i32 = arith.constant 0 : i32
    %c0_i32_0 = arith.constant 0 : i32
    return %arg0, %c0_i32 : i32, i32
  }
}

</mosaic_0001>

<llo_original>
// kernel: tpu_custom_call.1
$region0: #{tpu_custom_call.1}
  #allocation0 [shape = 'u32[]', space=smem, size = 0x4, offset = 0x4, fixed_abs, tag = 'smem constant byte address 0x4 - core index']
  #allocation1 [shape = 'u32[144,128]{1,0:T(1,128)}', space=vmem, size = 0x12000, scoped, tag = 'internal scratch']
  %s0 = inlined_call_operand.hbm [shape: bf16[32,128], index: 0, kind: input, shape index: {}]
  %s1 = inlined_call_operand.hbm [shape: bf16[128,256], index: 1, kind: input, shape index: {}]
  %s2 = inlined_call_operand.hbm [shape: bf16[32,128], index: 2, kind: output, shape index: {0}]
  %s3 = inlined_call_operand.hbm [shape: bf16[32,128], index: 3, kind: output, shape index: {1}]
  %s4 = inlined_call_operand.hbm [shape: f32[8,256], index: 4, kind: output, shape index: {2}]
  %5 = xla_tuple %s2, %s3, %s4
  %s6 = sld [smem:[#allocation0]]
  $region42: #{tpu_custom_call.1} parent=0
    _
  %s8 = ssub.s32 1, %s6
  %s9 = scalar_select 0, %s8, %s6
  $region1: #{tpu_custom_call.1} parent=0
    #allocation2 [shape = 'u8[8192]{0}', space=vmem, size = 0x2000, scoped, tag = 'input window, operand 0, single buffered']
    #allocation3 [shape = 's32[1]{0}', space=sflag, size = 0x4, scoped, tag = 'scoped memory for tpu_custom_call.1']
    #allocation4 [shape = 's32[1]{0}', space=sflag, size = 0x4, scoped, tag = 'scoped memory for tpu_custom_call.1']
    #allocation5 [shape = 'u8[65536]{0}', space=vmem, size = 0x10000, scoped, tag = 'input window, operand 1, single buffered']
    #allocation6 [shape = 's32[1]{0}', space=sflag, size = 0x4, scoped, tag = 'scoped memory for tpu_custom_call.1']
    #allocation7 [shape = 'u8[8192]{0}', space=vmem, size = 0x2000, scoped, tag = 'output window, operand 0, single buffered']
    #allocation8 [shape = 'u8[8192]{0}', space=vmem, size = 0x2000, scoped, tag = 'output window, operand 1, single buffered']
    #allocation9 [shape = 's32[1]{0}', space=sflag, size = 0x4, scoped, tag = 'scoped memory for tpu_custom_call.1']
    #allocation10 [shape = 'u8[8192]{0}', space=vmem, size = 0x2000, scoped, tag = 'output window, operand 2, single buffered']
    %10 = vsyncpa [#allocation3], 0
    %11 = vsyncpa [#allocation6], 0
    %12 = vsyncpa [#allocation4], 0
    %13 = vsyncpa [#allocation9], 0
    // Predicated region
    $region2: #{tpu_custom_call.1} parent=1 // pred_check
      _
    $region3: #{tpu_custom_call.1} parent=1 // pred_check_branch
      %15 = sbr.rel (0) target = $region5
    $region4: #{tpu_custom_call.1} parent=1 // pred_region
      %s17 = ssub.s32 256, 256
      %18 = vsyncadd [#allocation3], %s17
      %s19 = sshll.u32 [#allocation2], 4
      %s20 = int_to_ptr.vmem [resolvable:$true] %s19
      %25 = dma.hbm_to_vmem [thread:$0]  %s0, 256, %s20, [#allocation3], 64, 64, 4
    $region5: #{tpu_custom_call.1} parent=1 // pred_fallthru
      _
    // Predicated region
    $region6: #{tpu_custom_call.1} parent=1 // pred_check
      _
    $region7: #{tpu_custom_call.1} parent=1 // pred_check_branch
      %27 = sbr.rel (0) target = $region9
    $region8: #{tpu_custom_call.1} parent=1 // pred_region
      %s29 = ssub.s32 2048, 2048
      %30 = vsyncadd [#allocation6], %s29
      %s31 = sshll.u32 [#allocation5], 4
      %s32 = int_to_ptr.vmem [resolvable:$true] %s31
      %37 = dma.hbm_to_vmem [thread:$0]  %s1, 2048, %s32, [#allocation6], 128, 128, 8
    $region9: #{tpu_custom_call.1} parent=1 // pred_fallthru
      _
    // Predicated region
    $region10: #{tpu_custom_call.1} parent=1 // pred_check
      _
    $region11: #{tpu_custom_call.1} parent=1 // pred_check_branch
      %39 = sbr.rel (0) target = $region13
    $region12: #{tpu_custom_call.1} parent=1 // pred_region
      %40 = dma.done [#allocation3], 256
    $region13: #{tpu_custom_call.1} parent=1 // pred_fallthru
      _
    // Predicated region
    $region14: #{tpu_custom_call.1} parent=1 // pred_check
      _
    $region15: #{tpu_custom_call.1} parent=1 // pred_check_branch
      %42 = sbr.rel (0) target = $region17
    $region16: #{tpu_custom_call.1} parent=1 // pred_region
      %43 = dma.done [#allocation6], 2048
    $region17: #{tpu_custom_call.1} parent=1 // pred_fallthru
      _
    %v45 = vld [vmem:[#allocation2] sm:$0xf]
    %v46 = vld [vmem:[#allocation2 + $0x4] sm:$0xf]
    %v47 = vld [vmem:[#allocation2 + $0x8] sm:$0xf]
    %v48 = vld [vmem:[#allocation2 + $0xc] sm:$0xf]
    %v49 = vld [vmem:[#allocation5] sm:$0xff]
    %v50 = vld [vmem:[#allocation5 + $0x8] sm:$0xff]
    %v51 = vld [vmem:[#allocation5 + $0x10] sm:$0xff]
    %v52 = vld [vmem:[#allocation5 + $0x18] sm:$0xff]
    %v53 = vld [vmem:[#allocation5 + $0x20] sm:$0xff]
    %v54 = vld [vmem:[#allocation5 + $0x28] sm:$0xff]
    %v55 = vld [vmem:[#allocation5 + $0x30] sm:$0xff]
    %v56 = vld [vmem:[#allocation5 + $0x38] sm:$0xff]
    %v57 = vld [vmem:[#allocation5 + $0x40] sm:$0xff]
    %v58 = vld [vmem:[#allocation5 + $0x48] sm:$0xff]
    %v59 = vld [vmem:[#allocation5 + $0x50] sm:$0xff]
    %v60 = vld [vmem:[#allocation5 + $0x58] sm:$0xff]
    %v61 = vld [vmem:[#allocation5 + $0x60] sm:$0xff]
    %v62 = vld [vmem:[#allocation5 + $0x68] sm:$0xff]
    %v63 = vld [vmem:[#allocation5 + $0x70] sm:$0xff]
    %v64 = vld [vmem:[#allocation5 + $0x78] sm:$0xff]
    %v69 = vunpack.c.l.b16 %v45
    %v70 = vunpack.c.l.b16 %v46
    %v71 = vunpack.c.l.b16 %v47
    %v72 = vunpack.c.l.b16 %v48
    %v73 = vpack.c.b16 %v70, %v69
    %v74 = vpack.c.b16 %v72, %v71
    %v93 = vunpack.c.l.b16 %v49
    %v94 = vunpack.c.h.b16 %v49
    %v95 = vunpack.c.l.b16 %v50
    %v96 = vunpack.c.h.b16 %v50
    %v97 = vunpack.c.l.b16 %v51
    %v98 = vunpack.c.h.b16 %v51
    %v99 = vunpack.c.l.b16 %v52
    %v100 = vunpack.c.h.b16 %v52
    %v101 = vunpack.c.l.b16 %v53
    %v102 = vunpack.c.h.b16 %v53
    %v103 = vunpack.c.l.b16 %v54
    %v104 = vunpack.c.h.b16 %v54
    %v105 = vunpack.c.l.b16 %v55
    %v106 = vunpack.c.h.b16 %v55
    %v107 = vunpack.c.l.b16 %v56
    %v108 = vunpack.c.h.b16 %v56
    %v109 = vunpack.c.l.b16 %v57
    %v110 = vunpack.c.h.b16 %v57
    %v111 = vunpack.c.l.b16 %v58
    %v112 = vunpack.c.h.b16 %v58
    %v113 = vunpack.c.l.b16 %v59
    %v114 = vunpack.c.h.b16 %v59
    %v115 = vunpack.c.l.b16 %v60
    %v116 = vunpack.c.h.b16 %v60
    %v117 = vunpack.c.l.b16 %v61
    %v118 = vunpack.c.h.b16 %v61
    %v119 = vunpack.c.l.b16 %v62
    %v120 = vunpack.c.h.b16 %v62
    %v121 = vunpack.c.l.b16 %v63
    %v122 = vunpack.c.h.b16 %v63
    %v123 = vunpack.c.l.b16 %v64
    %v124 = vunpack.c.h.b16 %v64
    %v125 = vpack.c.b16 %v95, %v93
    %v126 = vpack.c.b16 %v96, %v94
    %v127 = vpack.c.b16 %v99, %v97
    %v128 = vpack.c.b16 %v100, %v98
    %v129 = vpack.c.b16 %v103, %v101
    %v130 = vpack.c.b16 %v104, %v102
    %v131 = vpack.c.b16 %v107, %v105
    %v132 = vpack.c.b16 %v108, %v106
    %v133 = vpack.c.b16 %v111, %v109
    %v134 = vpack.c.b16 %v112, %v110
    %v135 = vpack.c.b16 %v115, %v113
    %v136 = vpack.c.b16 %v116, %v114
    %v137 = vpack.c.b16 %v119, %v117
    %v138 = vpack.c.b16 %v120, %v118
    %v139 = vpack.c.b16 %v123, %v121
    %v140 = vpack.c.b16 %v124, %v122
    %157 = vmatprep.subr.bf16.mxu0 %v126
    %158 = vmatpush1.bf16.msra.mxu0 %v125
    %159 = vmatprep.subr.bf16.mxu0 %v128
    %160 = vmatpush1.bf16.msra.mxu0 %v127
    %161 = vmatprep.subr.bf16.mxu0 %v130
    %162 = vmatpush1.bf16.msra.mxu0 %v129
    %163 = vmatprep.subr.bf16.mxu0 %v132
    %164 = vmatpush1.bf16.msra.mxu0 %v131
    %165 = vmatprep.subr.bf16.mxu0 %v134
    %166 = vmatpush1.bf16.msra.mxu0 %v133
    %167 = vmatprep.subr.bf16.mxu0 %v136
    %168 = vmatpush1.bf16.msra.mxu0 %v135
    %169 = vmatprep.subr.bf16.mxu0 %v138
    %170 = vmatpush1.bf16.msra.mxu0 %v137
    %171 = vmatprep.subr.bf16.mxu0 %v140
    %172 = vmatpush1.bf16.msra.mxu0 %v139
    %173 = vmatprep.subr.bf16.mxu0 0
    %174 = vmatpush1.bf16.msra.mxu0 0
    %175 = vmatprep.subr.bf16.mxu0 0
    %176 = vmatpush1.bf16.msra.mxu0 0
    %177 = vmatprep.subr.bf16.mxu0 0
    %178 = vmatpush1.bf16.msra.mxu0 0
    %179 = vmatprep.subr.bf16.mxu0 0
    %180 = vmatpush1.bf16.msra.mxu0 0
    %181 = vmatprep.subr.bf16.mxu0 0
    %182 = vmatpush1.bf16.msra.mxu0 0
    %183 = vmatprep.subr.bf16.mxu0 0
    %184 = vmatpush1.bf16.msra.mxu0 0
    %185 = vmatprep.subr.bf16.mxu0 0
    %186 = vmatpush1.bf16.msra.mxu0 0
    %187 = vmatprep.subr.bf16.mxu0 0
    %188 = vmatpush1.bf16.msra.mxu0 0
    %189 = vmatprep.mubr.bf16.mxu0 0
    %190 = vmatmul.mubr.bf16.gmra.mrb[0].mxu0 %v73
    %v191 = vpop.f32.mrb[0].mxu0
    %v192 = vadd.f32 0.0, %v191
    %v193 = vpop.f32.mrb[0].mxu0
    %v194 = vadd.f32 0.0, %v193
    %v195 = vpop.f32.mrb[0].mxu0
    %v196 = vadd.f32 0.0, %v195
    %v197 = vpop.f32.mrb[0].mxu0
    %v198 = vadd.f32 0.0, %v197
    %199 = vmatprep.mubr.bf16.mxu0 0
    %200 = vmatmul.mubr.bf16.gmra.mrb[0].mxu0 %v74
    %v201 = vpop.f32.mrb[0].mxu0
    %v202 = vadd.f32 0.0, %v201
    %v203 = vpop.f32.mrb[0].mxu0
    %v204 = vadd.f32 0.0, %v203
    %v205 = vpop.f32.mrb[0].mxu0
    %v206 = vadd.f32 0.0, %v205
    %v207 = vpop.f32.mrb[0].mxu0
    %v208 = vadd.f32 0.0, %v207
    %209 = vdwg.mxu0
    %v210 = vpack.c.bf16 %v196, %v192
    %v211 = vpack.c.bf16 %v198, %v194
    %v212 = vpack.c.bf16 %v206, %v202
    %v213 = vpack.c.bf16 %v208, %v204
    %v216 = vunpack.c.l.b16 %v210
    %v217 = vunpack.c.h.b16 %v210
    %v218 = vunpack.c.l.b16 %v212
    %v219 = vunpack.c.h.b16 %v212
    %v220 = vpack.c.b16 %v216, %v216
    %v221 = vpack.c.b16 %v217, %v217
    %v222 = vpack.c.b16 %v218, %v218
    %v223 = vpack.c.b16 %v219, %v219
    %228 = vst [vmem:[#allocation7] sm:$0xf] %v220
    %229 = vst [vmem:[#allocation7 + $0x4] sm:$0xf] %v221
    %230 = vst [vmem:[#allocation7 + $0x8] sm:$0xf] %v222
    %231 = vst [vmem:[#allocation7 + $0xc] sm:$0xf] %v223
    %v234 = vunpack.c.l.b16 %v211
    %v235 = vunpack.c.h.b16 %v211
    %v236 = vunpack.c.l.b16 %v213
    %v237 = vunpack.c.h.b16 %v213
    %v238 = vpack.c.b16 %v234, %v234
    %v239 = vpack.c.b16 %v235, %v235
    %v240 = vpack.c.b16 %v236, %v236
    %v241 = vpack.c.b16 %v237, %v237
    %246 = vst [vmem:[#allocation8] sm:$0xf] %v238
    %247 = vst [vmem:[#allocation8 + $0x4] sm:$0xf] %v239
    %248 = vst [vmem:[#allocation8 + $0x8] sm:$0xf] %v240
    %249 = vst [vmem:[#allocation8 + $0xc] sm:$0xf] %v241
    %v250 = vunpack.c.l.bf16 %v210
    %v251 = vunpack.c.l.bf16 %v211
    %v252 = vunpack.c.h.bf16 %v210
    %v253 = vunpack.c.h.bf16 %v211
    %v254 = vunpack.c.l.bf16 %v212
    %v255 = vunpack.c.l.bf16 %v213
    %v256 = vunpack.c.h.bf16 %v212
    %v257 = vunpack.c.h.bf16 %v213
    %v258 = vadd.f32 %v250, %v252
    %v259 = vadd.f32 %v258, %v254
    %v260 = vadd.f32 %v259, %v256
    %v261 = vrot.slane %v260, 4
    %v262 = vadd.f32 %v260, %v261
    %v263 = vrot.slane %v262, 2
    %v264 = vadd.f32 %v262, %v263
    %v265 = vrot.slane %v264, 1
    %v266 = vadd.f32 %v264, %v265
    %v267 = vadd.f32 %v251, %v253
    %v268 = vadd.f32 %v267, %v255
    %v269 = vadd.f32 %v268, %v257
    %v270 = vrot.slane %v269, 4
    %v271 = vadd.f32 %v269, %v270
    %v272 = vrot.slane %v271, 2
    %v273 = vadd.f32 %v271, %v272
    %v274 = vrot.slane %v273, 1
    %v275 = vadd.f32 %v273, %v274
    %v276 = vmul.f32 %v250, %v250
    %v277 = vmul.f32 %v251, %v251
    %v278 = vmul.f32 %v252, %v252
    %v279 = vmul.f32 %v253, %v253
    %v280 = vmul.f32 %v254, %v254
    %v281 = vmul.f32 %v255, %v255
    %v282 = vmul.f32 %v256, %v256
    %v283 = vmul.f32 %v257, %v257
    %v284 = vadd.f32 %v276, %v278
    %v285 = vadd.f32 %v284, %v280
    %v286 = vadd.f32 %v285, %v282
    %v287 = vrot.slane %v286, 4
    %v288 = vadd.f32 %v286, %v287
    %v289 = vrot.slane %v288, 2
    %v290 = vadd.f32 %v288, %v289
    %v291 = vrot.slane %v290, 1
    %v292 = vadd.f32 %v290, %v291
    %v293 = vadd.f32 %v277, %v279
    %v294 = vadd.f32 %v293, %v281
    %v295 = vadd.f32 %v294, %v283
    %v296 = vrot.slane %v295, 4
    %v297 = vadd.f32 %v295, %v296
    %v298 = vrot.slane %v297, 2
    %v299 = vadd.f32 %v297, %v298
    %v300 = vrot.slane %v299, 1
    %v301 = vadd.f32 %v299, %v300
    %vm302 = vcmask 1040384
    %v303 = vsel %vm302, %v266, %v292
    %v304 = vsel %vm302, %v275, %v301
    %vm305 = vcmask 1041408
    %v306 = vsel %vm305, %v303, 0.0
    %v307 = vsel %vm305, %v304, 0.0
    %308 = vst [vmem:[#allocation10] sm:$0xff] %v306
    %309 = vst [vmem:[#allocation10 + $0x8] sm:$0xff] %v307
    // Predicated region
    $region18: #{tpu_custom_call.1} parent=1 // pred_check
      _
    $region19: #{tpu_custom_call.1} parent=1 // pred_check_branch
      %311 = sbr.rel (0) target = $region21
    $region20: #{tpu_custom_call.1} parent=1 // pred_region
      %s313 = ssub.s32 256, 256
      %314 = vsyncadd [#allocation4], %s313
      %s315 = sshll.u32 [#allocation7], 4
      %s316 = int_to_ptr.vmem [resolvable:$true] %s315
      %321 = dma.vmem_to_hbm [thread:$0]  %s316, 256, %s2, [#allocation4], 64, 64, 4
    $region21: #{tpu_custom_call.1} parent=1 // pred_fallthru
      _
    // Predicated region
    $region22: #{tpu_custom_call.1} parent=1 // pred_check
      _
    $region23: #{tpu_custom_call.1} parent=1 // pred_check_branch
      %323 = sbr.rel (0) target = $region25
    $region24: #{tpu_custom_call.1} parent=1 // pred_region
      %s325 = ssub.s32 256, 256
      %326 = vsyncadd [#allocation9], %s325
      %s327 = sshll.u32 [#allocation8], 4
      %s328 = int_to_ptr.vmem [resolvable:$true] %s327
      %333 = dma.vmem_to_hbm [thread:$0]  %s328, 256, %s3, [#allocation9], 64, 64, 4
    $region25: #{tpu_custom_call.1} parent=1 // pred_fallthru
      _
    // Predicated region
    $region26: #{tpu_custom_call.1} parent=1 // pred_check
      _
    $region27: #{tpu_custom_call.1} parent=1 // pred_check_branch
      %335 = sbr.rel (0) target = $region29
    $region28: #{tpu_custom_call.1} parent=1 // pred_region
      %s337 = ssub.s32 256, 256
      %338 = vsyncadd [#allocation9], %s337
      %s340 = sshll.u32 [#allocation10], 4
      %s341 = int_to_ptr.vmem [resolvable:$true] %s340
      %343 = dma.vmem_to_hbm [thread:$0]  %s341, 256, %s4, [#allocation9]
    $region29: #{tpu_custom_call.1} parent=1 // pred_fallthru
      _
    // Predicated region
    $region30: #{tpu_custom_call.1} parent=1 // pred_check
      _
    $region31: #{tpu_custom_call.1} parent=1 // pred_check_branch
      %345 = sbr.rel (0) target = $region33
    $region32: #{tpu_custom_call.1} parent=1 // pred_region
      %346 = dma.done [#allocation4], 256
    $region33: #{tpu_custom_call.1} parent=1 // pred_fallthru
      _
    // Predicated region
    $region34: #{tpu_custom_call.1} parent=1 // pred_check
      _
    $region35: #{tpu_custom_call.1} parent=1 // pred_check_branch
      %348 = sbr.rel (0) target = $region37
    $region36: #{tpu_custom_call.1} parent=1 // pred_region
      %349 = dma.done [#allocation9], 256
    $region37: #{tpu_custom_call.1} parent=1 // pred_fallthru
      _
    // Predicated region
    $region38: #{tpu_custom_call.1} parent=1 // pred_check
      _
    $region39: #{tpu_custom_call.1} parent=1 // pred_check_branch
      %351 = sbr.rel (0) target = $region41
    $region40: #{tpu_custom_call.1} parent=1 // pred_region
      %352 = dma.done [#allocation9], 256
    $region41: #{tpu_custom_call.1} parent=1 // pred_fallthru
      _
    %353 = vsyncpa [#allocation3], 1
    %354 = vsyncpa [#allocation6], 1
    %355 = vsyncpa [#allocation4], 1
    %356 = vsyncpa [#allocation9], 1

</llo_original>
